<compile_context>
chip_gen: v7x
topology: tpu7x:2x2x1
jax: 0.10.0
libtpu: 0.0.40
codegen_flags: <defaults>
</compile_context>

<pallas_src>
import functools

import jax
import jax.numpy as jnp
from jax import lax
from jax.experimental import pallas as pl
from jax.experimental.pallas import tpu as pltpu


def _ru(a, b):
    return (a + b - 1) // b * b


# ---------------------------------------------------------------------------
# Kernel: implicit-im2col GEMM.  One grid step computes a lane-dense
# (Cout, tl) block of flattened output columns for one image.
# ---------------------------------------------------------------------------
def _make_kernel(KH, KW, Wp, stride, Cout, tl, nl):
    def kernel(x_ref, w_ref, b_ref, o_ref):
        # x_ref : (1, Cin, Lin)      bf16  whole flattened padded image (+halo)
        # w_ref : (KH*KW, Cout, Cin) bf16  BN-scale-folded weights
        # b_ref : (Cout, 1)          f32   folded conv+BN bias
        # o_ref : (1, Cout, tl)            output column tile
        if nl > 1:
            base = pl.multiple_of(pl.program_id(1) * (tl * stride), 128)
        else:
            base = 0                                 # fully static slices
        acc = jnp.zeros((Cout, tl), jnp.float32)
        for kh in range(KH):                         # static unroll: KH*KW dots
            for kw in range(KW):
                start = base + kh * Wp + kw
                if stride == 1:
                    a = x_ref[0, :, pl.ds(start, tl)]
                else:
                    # TODO(synk): stride>1 path (strided lane load) unexercised here.
                    a = x_ref[0, :, pl.ds(start, tl, stride)]
                acc = acc + jnp.dot(w_ref[kh * KW + kw], a,
                                    preferred_element_type=jnp.float32)
        y = acc + b_ref[...]                         # folded conv bias + BN shift
        o_ref[0] = jnp.maximum(y, 0.0).astype(o_ref.dtype)   # ReLU
    return kernel


# ---------------------------------------------------------------------------
# Wrapper: NCHW in -> NCHW out (PyTorch module semantics)
# ---------------------------------------------------------------------------
@functools.partial(jax.jit,
                   static_argnames=("stride", "pad", "tl", "out_dtype"))
def conv2d_bn_relu(x_nchw, weight, conv_bias, bn_gamma, bn_beta,
                   bn_mean, bn_var, *, stride=1, pad=0, eps=1e-5,
                   tl=2048, out_dtype=jnp.float32):
    """x_nchw: (N, Cin, H, W); weight: (Cout, Cin, KH, KW) (PyTorch layout)."""
    N, Cin, H, W = x_nchw.shape
    Cout, _, KH, KW = weight.shape
    Hp, Wp = H + 2 * pad, W + 2 * pad
    Ho = (Hp - KH) // stride + 1
    Wo = (Wp - KW) // stride + 1

    # Columns computed per image: Ho rows of Wp (first Wo of each row valid).
    Lo = Ho * Wp
    tl_eff = max(128, (int(tl) // 128) * 128)        # multiple of 128
    tl_eff = min(tl_eff, _ru(Lo, 128))
    Lo_pad = _ru(Lo, tl_eff)
    nl = Lo_pad // tl_eff

    # Flattened per-image length needed (last column's halo must stay in-bounds).
    needed = stride * (Lo_pad - 1) + (KH - 1) * Wp + (KW - 1) + 1
    Lin = _ru(max(Hp * Wp, needed), 128)

    # Input glue: spatial pad, flatten (Hp,Wp), tail-pad, cast bf16 (NCHW is
    # already channels-before-spatial, so no transpose is needed at all).
    xp = jnp.pad(x_nchw, ((0, 0), (0, 0), (pad, pad), (pad, pad)))
    x_flat = xp.reshape(N, Cin, Hp * Wp).astype(jnp.bfloat16)
    x_flat = jnp.pad(x_flat, ((0, 0), (0, 0), (0, Lin - Hp * Wp)))

    # Fold inference-mode BN scale into the weights, shift into the bias.
    inv_std = lax.rsqrt(bn_var.astype(jnp.float32) + eps)
    scale = bn_gamma.astype(jnp.float32) * inv_std                    # (Cout,)
    w_f = weight.astype(jnp.float32) * scale[:, None, None, None]
    w_k = jnp.transpose(w_f, (2, 3, 0, 1)).reshape(KH * KW, Cout, Cin)
    w_k = w_k.astype(jnp.bfloat16)                                    # (9,Cout,Cin)
    bias = ((conv_bias.astype(jnp.float32) - bn_mean.astype(jnp.float32)) * scale
            + bn_beta.astype(jnp.float32)).reshape(Cout, 1)           # (Cout,1) f32

    # VMEM budget from padded block shapes (x2 double buffering), capped by HW.
    out_bytes = jnp.dtype(out_dtype).itemsize
    x_blk = _ru(Cin, 16) * Lin * 2
    w_blk = KH * KW * _ru(Cout, 16) * _ru(Cin, 128) * 2
    b_blk = _ru(Cout, 8) * 128 * 4
    o_blk = _ru(Cout, 8) * tl_eff * out_bytes
    blk_bytes = 2 * (x_blk + w_blk + b_blk + o_blk)
    try:
        cap = int(pltpu.get_tpu_info().vmem_capacity_bytes)
    except Exception:
        cap = 64 * 2 ** 20                       # conservative (v7x per-TC)
    vmem_limit = int(min(max(2 * blk_bytes, 16 * 2 ** 20), int(0.7 * cap)))

    kernel = _make_kernel(KH, KW, Wp, stride, Cout, tl_eff, nl)
    out_over = pl.pallas_call(
        kernel,
        out_shape=jax.ShapeDtypeStruct((N, Cout, Lo_pad), out_dtype),
        grid_spec=pltpu.PrefetchScalarGridSpec(
            num_scalar_prefetch=0,
            grid=(N, nl),
            in_specs=[
                pl.BlockSpec((1, Cin, Lin), lambda n, l: (n, 0, 0)),          # image
                pl.BlockSpec((KH * KW, Cout, Cin), lambda n, l: (0, 0, 0)),   # weights
                pl.BlockSpec((Cout, 1), lambda n, l: (0, 0)),                 # bias
            ],
            out_specs=pl.BlockSpec((1, Cout, tl_eff), lambda n, l: (n, 0, l)),
        ),
        compiler_params=pltpu.CompilerParams(
            dimension_semantics=("parallel", "parallel"),
            vmem_limit_bytes=vmem_limit),
    )(x_flat, w_k, bias)

    # Drop junk columns (wo' >= Wo) and the tail pad; result is already NCHW.
    out = out_over[:, :, :Lo].reshape(N, Cout, Ho, Wp)[:, :, :, :Wo]
    return out


# ---------------------------------------------------------------------------
# Pure-JAX f32 reference (PyTorch inference-mode semantics)
# ---------------------------------------------------------------------------
def _reference(x_nchw, weight, conv_bias, gamma, beta, mean, var,
               stride=1, pad=0, eps=1e-5):
    y = lax.conv_general_dilated(
        x_nchw.astype(jnp.float32), weight.astype(jnp.float32),
        window_strides=(stride, stride),
        padding=((pad, pad), (pad, pad)),
        dimension_numbers=("NCHW", "OIHW", "NCHW"))
    y = y + conv_bias.reshape(1, -1, 1, 1)
    y = (y - mean.reshape(1, -1, 1, 1)) * lax.rsqrt(var.reshape(1, -1, 1, 1) + eps)
    y = y * gamma.reshape(1, -1, 1, 1) + beta.reshape(1, -1, 1, 1)
    return jnp.maximum(y, 0.0)


if __name__ == "__main__":
    # Small shapes consistent with the module: conv2d_bn_relu(4, 8, ksize=3)
    N, Cin, H, W = 2, 4, 16, 16
    Cout, KH, KW = 8, 3, 3

    key = jax.random.PRNGKey(0)
    kx, kw_, kb, kg, kbeta, km, kv = jax.random.split(key, 7)

    x = jax.random.normal(kx, (N, Cin, H, W), dtype=jnp.float32)
    weight = 0.1 * jax.random.normal(kw_, (Cout, Cin, KH, KW), dtype=jnp.float32)
    conv_bias = 0.05 * jax.random.normal(kb, (Cout,), dtype=jnp.float32)
    bn_gamma = 1.0 + 0.1 * jax.random.normal(kg, (Cout,), dtype=jnp.float32)
    bn_beta = 0.1 * jax.random.normal(kbeta, (Cout,), dtype=jnp.float32)
    bn_mean = 0.05 * jax.random.normal(km, (Cout,), dtype=jnp.float32)
    bn_var = jnp.abs(1.0 + 0.1 * jax.random.normal(kv, (Cout,), dtype=jnp.float32))

    # pad=0 (module default) and pad=1 exercise the same fused path.
    for pad in (0, 1):
        out = conv2d_bn_relu(x, weight, conv_bias, bn_gamma, bn_beta,
                             bn_mean, bn_var, stride=1, pad=pad)
        out = jax.block_until_ready(out)
        ref = _reference(x, weight, conv_bias, bn_gamma, bn_beta, bn_mean,
                         bn_var, stride=1, pad=pad)
        Ho = H + 2 * pad - KH + 1
        assert out.shape == (N, Cout, Ho, Ho), out.shape
        # Streamed operands are bf16 (f32 accumulation) -> bf16 tolerance.
        assert jnp.allclose(out, ref, atol=5e-2, rtol=5e-2), \
            float(jnp.max(jnp.abs(out - ref)))

    print("KERNEL_OK")
</pallas_src>

<mosaic_0001>
module attributes {stable_mosaic.version = 11 : i64} {
  func.func @kernel(%arg0: i32, %arg1: i32, %arg2: memref<1x4x384xbf16, #tpu.memory_space<vmem>>, %arg3: memref<9x8x4xbf16, #tpu.memory_space<vmem>>, %arg4: memref<8x1xf32, #tpu.memory_space<vmem>>, %arg5: memref<1x8x256xf32, #tpu.memory_space<vmem>>) attributes {dimension_semantics = [#tpu.dimension_semantics<parallel>, #tpu.dimension_semantics<parallel>], iteration_bounds = array<i64: 2, 1>, scalar_prefetch = 0 : i64, scratch_operands = 0 : i64, tpu.core_type = #tpu.core_type<tc>, window_params = [{transform_indices = @transform_0, window_bounds = array<i64: 1, 4, 384>}, {pipeline_mode = #tpu.pipeline_mode<synchronous>, transform_indices = @transform_1, window_bounds = array<i64: 9, 8, 4>}, {pipeline_mode = #tpu.pipeline_mode<synchronous>, transform_indices = @transform_2, window_bounds = array<i64: 8, 1>}, {transform_indices = @transform_3, window_bounds = array<i64: 1, 8, 256>}]} {
    %cst = arith.constant 0.000000e+00 : f32
    %0 = vector.broadcast %cst : f32 to vector<8x256xf32>
    %c0 = arith.constant 0 : index
    %c0_0 = arith.constant 0 : index
    %c0_1 = arith.constant 0 : index
    %1 = vector.load %arg2[%c0, %c0_0, %c0_1] : memref<1x4x384xbf16, #tpu.memory_space<vmem>>, vector<1x4x256xbf16>
    %2 = vector.shape_cast %1 : vector<1x4x256xbf16> to vector<4x256xbf16>
    %c0_2 = arith.constant 0 : index
    %c0_3 = arith.constant 0 : index
    %c0_4 = arith.constant 0 : index
    %3 = vector.load %arg3[%c0_2, %c0_3, %c0_4] : memref<9x8x4xbf16, #tpu.memory_space<vmem>>, vector<1x8x4xbf16>
    %4 = vector.shape_cast %3 : vector<1x8x4xbf16> to vector<8x4xbf16>
    %cst_5 = arith.constant dense<0.000000e+00> : vector<8x256xf32>
    %5 = tpu.matmul %4, %2, %cst_5 {dimension_numbers = #tpu.dot_dimension_numbers<[1], [0], [0], [1], [0, 0, 1, 1], [], []>} : vector<8x4xbf16>, vector<4x256xbf16>, vector<8x256xf32> -> vector<8x256xf32>
    %6 = arith.addf %0, %5 : vector<8x256xf32>
    %c0_6 = arith.constant 0 : index
    %c0_7 = arith.constant 0 : index
    %c1 = arith.constant 1 : index
    %7 = vector.load %arg2[%c0_6, %c0_7, %c1] : memref<1x4x384xbf16, #tpu.memory_space<vmem>>, vector<1x4x256xbf16>
    %8 = vector.shape_cast %7 : vector<1x4x256xbf16> to vector<4x256xbf16>
    %c1_8 = arith.constant 1 : index
    %c0_9 = arith.constant 0 : index
    %c0_10 = arith.constant 0 : index
    %9 = vector.load %arg3[%c1_8, %c0_9, %c0_10] : memref<9x8x4xbf16, #tpu.memory_space<vmem>>, vector<1x8x4xbf16>
    %10 = vector.shape_cast %9 : vector<1x8x4xbf16> to vector<8x4xbf16>
    %cst_11 = arith.constant dense<0.000000e+00> : vector<8x256xf32>
    %11 = tpu.matmul %10, %8, %cst_11 {dimension_numbers = #tpu.dot_dimension_numbers<[1], [0], [0], [1], [0, 0, 1, 1], [], []>} : vector<8x4xbf16>, vector<4x256xbf16>, vector<8x256xf32> -> vector<8x256xf32>
    %12 = arith.addf %6, %11 : vector<8x256xf32>
    %c0_12 = arith.constant 0 : index
    %c0_13 = arith.constant 0 : index
    %c2 = arith.constant 2 : index
    %13 = vector.load %arg2[%c0_12, %c0_13, %c2] : memref<1x4x384xbf16, #tpu.memory_space<vmem>>, vector<1x4x256xbf16>
    %14 = vector.shape_cast %13 : vector<1x4x256xbf16> to vector<4x256xbf16>
    %c2_14 = arith.constant 2 : index
    %c0_15 = arith.constant 0 : index
    %c0_16 = arith.constant 0 : index
    %15 = vector.load %arg3[%c2_14, %c0_15, %c0_16] : memref<9x8x4xbf16, #tpu.memory_space<vmem>>, vector<1x8x4xbf16>
    %16 = vector.shape_cast %15 : vector<1x8x4xbf16> to vector<8x4xbf16>
    %cst_17 = arith.constant dense<0.000000e+00> : vector<8x256xf32>
    %17 = tpu.matmul %16, %14, %cst_17 {dimension_numbers = #tpu.dot_dimension_numbers<[1], [0], [0], [1], [0, 0, 1, 1], [], []>} : vector<8x4xbf16>, vector<4x256xbf16>, vector<8x256xf32> -> vector<8x256xf32>
    %18 = arith.addf %12, %17 : vector<8x256xf32>
    %c0_18 = arith.constant 0 : index
    %c0_19 = arith.constant 0 : index
    %c16 = arith.constant 16 : index
    %19 = vector.load %arg2[%c0_18, %c0_19, %c16] : memref<1x4x384xbf16, #tpu.memory_space<vmem>>, vector<1x4x256xbf16>
    %20 = vector.shape_cast %19 : vector<1x4x256xbf16> to vector<4x256xbf16>
    %c3 = arith.constant 3 : index
    %c0_20 = arith.constant 0 : index
    %c0_21 = arith.constant 0 : index
    %21 = vector.load %arg3[%c3, %c0_20, %c0_21] : memref<9x8x4xbf16, #tpu.memory_space<vmem>>, vector<1x8x4xbf16>
    %22 = vector.shape_cast %21 : vector<1x8x4xbf16> to vector<8x4xbf16>
    %cst_22 = arith.constant dense<0.000000e+00> : vector<8x256xf32>
    %23 = tpu.matmul %22, %20, %cst_22 {dimension_numbers = #tpu.dot_dimension_numbers<[1], [0], [0], [1], [0, 0, 1, 1], [], []>} : vector<8x4xbf16>, vector<4x256xbf16>, vector<8x256xf32> -> vector<8x256xf32>
    %24 = arith.addf %18, %23 : vector<8x256xf32>
    %c0_23 = arith.constant 0 : index
    %c0_24 = arith.constant 0 : index
    %c17 = arith.constant 17 : index
    %25 = vector.load %arg2[%c0_23, %c0_24, %c17] : memref<1x4x384xbf16, #tpu.memory_space<vmem>>, vector<1x4x256xbf16>
    %26 = vector.shape_cast %25 : vector<1x4x256xbf16> to vector<4x256xbf16>
    %c4 = arith.constant 4 : index
    %c0_25 = arith.constant 0 : index
    %c0_26 = arith.constant 0 : index
    %27 = vector.load %arg3[%c4, %c0_25, %c0_26] : memref<9x8x4xbf16, #tpu.memory_space<vmem>>, vector<1x8x4xbf16>
    %28 = vector.shape_cast %27 : vector<1x8x4xbf16> to vector<8x4xbf16>
    %cst_27 = arith.constant dense<0.000000e+00> : vector<8x256xf32>
    %29 = tpu.matmul %28, %26, %cst_27 {dimension_numbers = #tpu.dot_dimension_numbers<[1], [0], [0], [1], [0, 0, 1, 1], [], []>} : vector<8x4xbf16>, vector<4x256xbf16>, vector<8x256xf32> -> vector<8x256xf32>
    %30 = arith.addf %24, %29 : vector<8x256xf32>
    %c0_28 = arith.constant 0 : index
    %c0_29 = arith.constant 0 : index
    %c18 = arith.constant 18 : index
    %31 = vector.load %arg2[%c0_28, %c0_29, %c18] : memref<1x4x384xbf16, #tpu.memory_space<vmem>>, vector<1x4x256xbf16>
    %32 = vector.shape_cast %31 : vector<1x4x256xbf16> to vector<4x256xbf16>
    %c5 = arith.constant 5 : index
    %c0_30 = arith.constant 0 : index
    %c0_31 = arith.constant 0 : index
    %33 = vector.load %arg3[%c5, %c0_30, %c0_31] : memref<9x8x4xbf16, #tpu.memory_space<vmem>>, vector<1x8x4xbf16>
    %34 = vector.shape_cast %33 : vector<1x8x4xbf16> to vector<8x4xbf16>
    %cst_32 = arith.constant dense<0.000000e+00> : vector<8x256xf32>
    %35 = tpu.matmul %34, %32, %cst_32 {dimension_numbers = #tpu.dot_dimension_numbers<[1], [0], [0], [1], [0, 0, 1, 1], [], []>} : vector<8x4xbf16>, vector<4x256xbf16>, vector<8x256xf32> -> vector<8x256xf32>
    %36 = arith.addf %30, %35 : vector<8x256xf32>
    %c0_33 = arith.constant 0 : index
    %c0_34 = arith.constant 0 : index
    %c32 = arith.constant 32 : index
    %37 = vector.load %arg2[%c0_33, %c0_34, %c32] : memref<1x4x384xbf16, #tpu.memory_space<vmem>>, vector<1x4x256xbf16>
    %38 = vector.shape_cast %37 : vector<1x4x256xbf16> to vector<4x256xbf16>
    %c6 = arith.constant 6 : index
    %c0_35 = arith.constant 0 : index
    %c0_36 = arith.constant 0 : index
    %39 = vector.load %arg3[%c6, %c0_35, %c0_36] : memref<9x8x4xbf16, #tpu.memory_space<vmem>>, vector<1x8x4xbf16>
    %40 = vector.shape_cast %39 : vector<1x8x4xbf16> to vector<8x4xbf16>
    %cst_37 = arith.constant dense<0.000000e+00> : vector<8x256xf32>
    %41 = tpu.matmul %40, %38, %cst_37 {dimension_numbers = #tpu.dot_dimension_numbers<[1], [0], [0], [1], [0, 0, 1, 1], [], []>} : vector<8x4xbf16>, vector<4x256xbf16>, vector<8x256xf32> -> vector<8x256xf32>
    %42 = arith.addf %36, %41 : vector<8x256xf32>
    %c0_38 = arith.constant 0 : index
    %c0_39 = arith.constant 0 : index
    %c33 = arith.constant 33 : index
    %43 = vector.load %arg2[%c0_38, %c0_39, %c33] : memref<1x4x384xbf16, #tpu.memory_space<vmem>>, vector<1x4x256xbf16>
    %44 = vector.shape_cast %43 : vector<1x4x256xbf16> to vector<4x256xbf16>
    %c7 = arith.constant 7 : index
    %c0_40 = arith.constant 0 : index
    %c0_41 = arith.constant 0 : index
    %45 = vector.load %arg3[%c7, %c0_40, %c0_41] : memref<9x8x4xbf16, #tpu.memory_space<vmem>>, vector<1x8x4xbf16>
    %46 = vector.shape_cast %45 : vector<1x8x4xbf16> to vector<8x4xbf16>
    %cst_42 = arith.constant dense<0.000000e+00> : vector<8x256xf32>
    %47 = tpu.matmul %46, %44, %cst_42 {dimension_numbers = #tpu.dot_dimension_numbers<[1], [0], [0], [1], [0, 0, 1, 1], [], []>} : vector<8x4xbf16>, vector<4x256xbf16>, vector<8x256xf32> -> vector<8x256xf32>
    %48 = arith.addf %42, %47 : vector<8x256xf32>
    %c0_43 = arith.constant 0 : index
    %c0_44 = arith.constant 0 : index
    %c34 = arith.constant 34 : index
    %49 = vector.load %arg2[%c0_43, %c0_44, %c34] : memref<1x4x384xbf16, #tpu.memory_space<vmem>>, vector<1x4x256xbf16>
    %50 = vector.shape_cast %49 : vector<1x4x256xbf16> to vector<4x256xbf16>
    %c8 = arith.constant 8 : index
    %c0_45 = arith.constant 0 : index
    %c0_46 = arith.constant 0 : index
    %51 = vector.load %arg3[%c8, %c0_45, %c0_46] : memref<9x8x4xbf16, #tpu.memory_space<vmem>>, vector<1x8x4xbf16>
    %52 = vector.shape_cast %51 : vector<1x8x4xbf16> to vector<8x4xbf16>
    %cst_47 = arith.constant dense<0.000000e+00> : vector<8x256xf32>
    %53 = tpu.matmul %52, %50, %cst_47 {dimension_numbers = #tpu.dot_dimension_numbers<[1], [0], [0], [1], [0, 0, 1, 1], [], []>} : vector<8x4xbf16>, vector<4x256xbf16>, vector<8x256xf32> -> vector<8x256xf32>
    %54 = arith.addf %48, %53 : vector<8x256xf32>
    %c0_48 = arith.constant 0 : index
    %c0_49 = arith.constant 0 : index
    %55 = vector.load %arg4[%c0_48, %c0_49] : memref<8x1xf32, #tpu.memory_space<vmem>>, vector<8x1xf32>
    %56 = vector.broadcast %55 : vector<8x1xf32> to vector<8x256xf32>
    %57 = arith.addf %54, %56 : vector<8x256xf32>
    %cst_50 = arith.constant 0.000000e+00 : f32
    %58 = vector.broadcast %cst_50 : f32 to vector<8x256xf32>
    %59 = arith.maximumf %57, %58 : vector<8x256xf32>
    %c0_51 = arith.constant 0 : index
    %c0_52 = arith.constant 0 : index
    %c0_53 = arith.constant 0 : index
    %60 = vector.load %arg5[%c0_51, %c0_52, %c0_53] : memref<1x8x256xf32, #tpu.memory_space<vmem>>, vector<1x8x256xf32>
    %61 = vector.shape_cast %60 : vector<1x8x256xf32> to vector<8x256xf32>
    %62 = vector.shape_cast %59 : vector<8x256xf32> to vector<1x8x256xf32>
    tpu.vector_store %arg5[%c0_51, %c0_52, %c0_53], %62 {strides = array<i32>} : memref<1x8x256xf32, #tpu.memory_space<vmem>>, vector<1x8x256xf32>,
    return
  }
  func.func @transform_0(%arg0: i32, %arg1: i32) -> (i32, i32, i32) {
    %c0_i32 = arith.constant 0 : i32
    %c0_i32_0 = arith.constant 0 : i32
    %c0_i32_1 = arith.constant 0 : i32
    return %arg0, %c0_i32, %c0_i32_0 : i32, i32, i32
  }
  func.func @transform_1(%arg0: i32, %arg1: i32) -> (i32, i32, i32) {
    %c0_i32 = arith.constant 0 : i32
    %c0_i32_0 = arith.constant 0 : i32
    %c0_i32_1 = arith.constant 0 : i32
    %c0_i32_2 = arith.constant 0 : i32
    return %c0_i32, %c0_i32_0, %c0_i32_1 : i32, i32, i32
  }
  func.func @transform_2(%arg0: i32, %arg1: i32) -> (i32, i32) {
    %c0_i32 = arith.constant 0 : i32
    %c0_i32_0 = arith.constant 0 : i32
    %c0_i32_1 = arith.constant 0 : i32
    return %c0_i32, %c0_i32_0 : i32, i32
  }
  func.func @transform_3(%arg0: i32, %arg1: i32) -> (i32, i32, i32) {
    %c0_i32 = arith.constant 0 : i32
    %c0_i32_0 = arith.constant 0 : i32
    return %arg0, %c0_i32, %arg1 : i32, i32, i32
  }
}

</mosaic_0001>

<llo_original>
// kernel: conv2d_bn_relu.1
$region0: #{conv2d_bn_relu.1}
  #allocation0 [shape = 'u32[]', space=smem, size = 0x4, offset = 0x4, fixed_abs, tag = 'smem constant byte address 0x4 - core index']
  #allocation1 [shape = 'u32[144,128]{1,0:T(1,128)}', space=vmem, size = 0x12000, scoped, tag = 'internal scratch']
  %s0 = inlined_call_operand.vmem [shape: bf16[2,4,384], index: 0, kind: input, shape index: {}]
  %s1 = inlined_call_operand.vmem [shape: bf16[9,8,4], index: 1, kind: input, shape index: {}]
  %s2 = inlined_call_operand.vmem [shape: f32[8,1], index: 2, kind: input, shape index: {}]
  %s3 = inlined_call_operand.vmem [shape: f32[2,8,256], index: 3, kind: output, shape index: {}]
  %s4 = sld [smem:[#allocation0]]
  $region45: #{conv2d_bn_relu.1} parent=0
    _
  %s6 = ssub.s32 1, %s4
  %s7 = scalar_select 0, %s6, %s4
  loop: start=0, step=1, limit=4
  $region2: #{conv2d_bn_relu.1} parent=0 // loop_pre_header
    _
  $region3: #{conv2d_bn_relu.1} parent=0 // loop_header
    %s9 = sphi 0, %s13
    %p10 = scmp.ge.s32.totalorder %s9, 4
    %s16 = sphi 0, %s28
    %s17 = sphi 0, %s24
    %s18 = sphi 0, %s16
    %s19 = sphi 0, %s17
    %s20 = sphi 0, %s18
    %s21 = sphi 0, %s19
    %s31 = sphi 0, %s33
    %s34 = sphi 0, %s31
    %s35 = sphi 0, %s34
    %s51 = sphi 0, %s35
    %s55 = sphi 0, %s55
    %s57 = sphi 0, %s55
    %s58 = sphi 0, %s57
    %s72 = sphi 0, %s58
    %s76 = sphi 0, %s76
    %s78 = sphi 0, %s76
    %s79 = sphi 0, %s78
    %s93 = sphi 0, %s79
    %s101 = sphi 0, %s103
    %s104 = sphi 0, %s101
    %s105 = sphi 0, %s104
    %s121 = sphi 0, %s105
  $region4: #{conv2d_bn_relu.1} parent=0 // loop_header_branch
    %12 = sbr.rel (%p10) target = $region8
  $region5: #{conv2d_bn_relu.1} parent=0 // loop_body
    %s14 = ssub.s32 %s9, 1
    %s15 = ssub.s32 %s9, 2
    %s22 = sadd.s32 1, %s17
    %p23 = scmp.ge.s32.totalorder %s22, 1
    %s24 = scalar_select %p23, 0, %s22
    %s25 = sadd.s32 1, %s16
    %s26 = scalar_select %p23, %s25, %s16
    %p27 = scmp.ge.s32.totalorder %s26, 2
    %s28 = scalar_select %p27, 0, %s26
    %s29 = ssub.s32 %s16, %s28
    %p30 = scmp.eq.s32.totalorder %s29, 0
    %s32 = sadd.s32 %s31, 1
    %s33 = scalar_select %p30, %s31, %s32
    %p36 = pneg %p30
    %p37 = scmp.eq.s32.totalorder %s9, 1
    %p38 = por %p36, %p37
    %p39 = scmp.ne.s32.totalorder %s31, %s34
    %p40 = scmp.eq.s32.totalorder %s9, 0
    %p41 = por %p39, %p40
    %p42 = scmp.ne.s32.totalorder %s31, %s34
    %p43 = scmp.eq.s32.totalorder %s14, 1
    %p44 = por %p42, %p43
    %p45 = scmp.ne.s32.totalorder %s34, %s35
    %p46 = scmp.eq.s32.totalorder %s14, 0
    %p47 = por %p45, %p46
    %p48 = scmp.ne.s32.totalorder %s34, %s35
    %p49 = scmp.eq.s32.totalorder %s15, 1
    %p50 = por %p48, %p49
    %p52 = scmp.ne.s32.totalorder %s35, %s51
    %p53 = scmp.eq.s32.totalorder %s15, 0
    %p54 = por %p52, %p53
    %s56 = sadd.s32 %s55, 1
    %p59 = scmp.eq.s32.totalorder %s9, 1
    %p60 = scmp.ne.s32.totalorder %s55, %s57
    %p61 = scmp.eq.s32.totalorder %s9, 0
    %p62 = por %p60, %p61
    %p63 = scmp.ne.s32.totalorder %s55, %s57
    %p64 = scmp.eq.s32.totalorder %s14, 1
    %p65 = por %p63, %p64
    %p66 = scmp.ne.s32.totalorder %s57, %s58
    %p67 = scmp.eq.s32.totalorder %s14, 0
    %p68 = por %p66, %p67
    %p69 = scmp.ne.s32.totalorder %s57, %s58
    %p70 = scmp.eq.s32.totalorder %s15, 1
    %p71 = por %p69, %p70
    %p73 = scmp.ne.s32.totalorder %s58, %s72
    %p74 = scmp.eq.s32.totalorder %s15, 0
    %p75 = por %p73, %p74
    %s77 = sadd.s32 %s76, 1
    %p80 = scmp.eq.s32.totalorder %s9, 1
    %p81 = scmp.ne.s32.totalorder %s76, %s78
    %p82 = scmp.eq.s32.totalorder %s9, 0
    %p83 = por %p81, %p82
    %p84 = scmp.ne.s32.totalorder %s76, %s78
    %p85 = scmp.eq.s32.totalorder %s14, 1
    %p86 = por %p84, %p85
    %p87 = scmp.ne.s32.totalorder %s78, %s79
    %p88 = scmp.eq.s32.totalorder %s14, 0
    %p89 = por %p87, %p88
    %p90 = scmp.ne.s32.totalorder %s78, %s79
    %p91 = scmp.eq.s32.totalorder %s15, 1
    %p92 = por %p90, %p91
    %p94 = scmp.ne.s32.totalorder %s79, %s93
    %p95 = scmp.eq.s32.totalorder %s15, 0
    %p96 = por %p94, %p95
    %s97 = ssub.s32 %s16, %s28
    %s98 = ssub.s32 %s17, %s24
    %s99 = sor.u32 %s97, %s98
    %p100 = scmp.eq.s32.totalorder %s99, 0
    %s102 = sadd.s32 %s101, 1
    %s103 = scalar_select %p100, %s101, %s102
    %p106 = pneg %p100
    %p107 = scmp.eq.s32.totalorder %s9, 1
    %p108 = por %p106, %p107
    %p109 = scmp.ne.s32.totalorder %s101, %s104
    %p110 = scmp.eq.s32.totalorder %s9, 0
    %p111 = por %p109, %p110
    %p112 = scmp.ne.s32.totalorder %s101, %s104
    %p113 = scmp.eq.s32.totalorder %s14, 1
    %p114 = por %p112, %p113
    %p115 = scmp.ne.s32.totalorder %s104, %s105
    %p116 = scmp.eq.s32.totalorder %s14, 0
    %p117 = por %p115, %p116
    %p118 = scmp.ne.s32.totalorder %s104, %s105
    %p119 = scmp.eq.s32.totalorder %s15, 1
    %p120 = por %p118, %p119
    %p122 = scmp.ne.s32.totalorder %s105, %s121
    %p123 = scmp.eq.s32.totalorder %s15, 0
    %p124 = por %p122, %p123
    %p125 = scmp.le.s32.totalorder 1, %s9
    %p126 = scmp.lt.s32.totalorder %s9, 3
    %p127 = pnand %p125, %p126
    %p128 = pneg %p127
    // Predicated region
    $region9: #{conv2d_bn_relu.1} parent=5 // pred_check
      _
    $region10: #{conv2d_bn_relu.1} parent=5 // pred_check_branch
      %130 = sbr.rel (%p127) target = $region12
    $region11: #{conv2d_bn_relu.1} parent=5 // pred_region
      %s131 = ssub.s32 %s9, 1
      // Predicated region
      $region13: #{conv2d_bn_relu.1} parent=11 // pred_check
        %p132 = pneg %p68
      $region14: #{conv2d_bn_relu.1} parent=11 // pred_check_branch
        %134 = sbr.rel (%p132) target = $region16
      $region15: #{conv2d_bn_relu.1} parent=11 // pred_region
        _
      $region16: #{conv2d_bn_relu.1} parent=11 // pred_fallthru
        _
      // Predicated region
      $region17: #{conv2d_bn_relu.1} parent=11 // pred_check
        %p135 = pneg %p89
      $region18: #{conv2d_bn_relu.1} parent=11 // pred_check_branch
        %137 = sbr.rel (%p135) target = $region20
      $region19: #{conv2d_bn_relu.1} parent=11 // pred_region
        _
      $region20: #{conv2d_bn_relu.1} parent=11 // pred_fallthru
        _
    $region12: #{conv2d_bn_relu.1} parent=5 // pred_fallthru
      _
    %p138 = scmp.lt.s32.totalorder %s9, 2
    // Predicated region
    $region21: #{conv2d_bn_relu.1} parent=5 // pred_check
      %p139 = pneg %p138
    $region22: #{conv2d_bn_relu.1} parent=5 // pred_check_branch
      %141 = sbr.rel (%p139) target = $region24
    $region23: #{conv2d_bn_relu.1} parent=5 // pred_region
      // Predicated region
      $region25: #{conv2d_bn_relu.1} parent=23 // pred_check
        %p142 = pneg %p41
      $region26: #{conv2d_bn_relu.1} parent=23 // pred_check_branch
        %144 = sbr.rel (%p142) target = $region28
      $region27: #{conv2d_bn_relu.1} parent=23 // pred_region
        %p145 = scmp.lt.s32.totalorder %s16, 1
        %s146 = scalar_select %p145, %s16, 1
        %s147 = smul.addr %s146, 3
        %s148 = smul.addr %s147, 2
        %s149 = scalar_lea.vmem %s0, %s148
      $region28: #{conv2d_bn_relu.1} parent=23 // pred_fallthru
        _
    $region24: #{conv2d_bn_relu.1} parent=5 // pred_fallthru
      _
    %p150 = scmp.le.s32.totalorder 1, %s9
    %p151 = scmp.lt.s32.totalorder %s9, 3
    %p152 = pnand %p150, %p151
    %p153 = pneg %p152
    // Predicated region
    $region29: #{conv2d_bn_relu.1} parent=5 // pred_check
      _
    $region30: #{conv2d_bn_relu.1} parent=5 // pred_check_branch
      %155 = sbr.rel (%p152) target = $region32
    $region31: #{conv2d_bn_relu.1} parent=5 // pred_region
      %s156 = ssub.s32 %s9, 1
      %p157 = scmp.lt.s32.totalorder %s18, 1
      %s158 = scalar_select %p157, %s18, 1
      %s159 = smul.addr %s158, 3
      %s160 = smul.addr %s159, 2
      %s161 = scalar_lea.vmem %s0, %s160
      %p162 = pneg %p47
      %p163 = pneg %p44
      %p164 = pneg %p68
      %p165 = pneg %p65
      %p166 = pneg %p89
      %p167 = pneg %p86
      %p168 = pneg %p117
      %p169 = pneg %p114
      %s170 = smul.u32 2, %s19
      %p171 = scmp.lt.s32.totalorder %s18, 1
      %s172 = scalar_select %p171, %s18, 1
      %p173 = scmp.lt.s32.totalorder %s170, 1
      %s174 = scalar_select %p173, %s170, 1
      %s175 = smul.addr %s172, 2
      %s176 = sadd.s32 %s174, %s175
      %s177 = smul.addr %s176, 8
      %s178 = scalar_lea.vmem %s3, %s177
      %p179 = scmp.lt.s32.totalorder %s18, 1
      %s180 = scalar_select %p179, %s18, 1
      %s181 = smul.addr %s180, 3
      %s182 = smul.addr %s181, 2
      %s183 = scalar_lea.vmem %s0, %s182
      %s184 = smul.u32 2, %s19
      %p185 = scmp.lt.s32.totalorder %s18, 1
      %s186 = scalar_select %p185, %s18, 1
      %p187 = scmp.lt.s32.totalorder %s184, 1
      %s188 = scalar_select %p187, %s184, 1
      %s189 = smul.addr %s186, 2
      %s190 = sadd.s32 %s188, %s189
      %s191 = smul.addr %s190, 8
      %s192 = scalar_lea.vmem %s3, %s191
      %s193 = smul.u32 2, %s19
      %v195 = vld [vmem:[%s183] sm:$0xf]
      %v196 = vld [vmem:[%s1] sm:$0xf]
      %v197 = vld [vmem:[%s183] sm:$0x3f]
      %s198 = scalar_lea.vmem %s1, 4
      %v199 = vld [vmem:[%s198] sm:$0xf]
      %v201 = vcombine.high %v197, %v197
      %v203 = vunpack.c.l.s4 1983009808
      %v204 = vunpack.c.0.s8 %v203
      %v205 = vlaneseq
      %v206 = vshrl.u32 %v205, 7
      %v207 = vsub.s32 %v204, %v206
      %v208 = vrot.slane %v197, %v207
      %v210 = vunpack.c.l.s4 1983009808
      %v211 = vunpack.c.0.s8 %v210
      %v212 = vlaneseq
      %v213 = vshrl.u32 %v212, 7
      %v214 = vsub.s32 %v211, %v213
      %v215 = vrot.slane %v201, %v214
      %v216 = vcombine.high %v208, %v208
      %217 = vrot.lane.b32.xlu0 %v208, 127
      %v218 = vpop.permute.xlu0 %217
      %219 = vrot.lane.b32.xlu0 %v216, 127
      %v220 = vpop.permute.xlu0 %219
      %221 = vrot.lane.b32.xlu0 %v215, 127
      %v222 = vpop.permute.xlu0 %221
      %vm223 = vcmask 1039360
      %v224 = vsel %vm223, %v218, %v220
      %v225 = vsel %vm223, %v220, %v222
      %vm226 = vcmask 31744
      %v228 = vsel %vm226, %v199, 0
      %vm230 = vcmask 1041408
      %v232 = vsel %vm230, %v224, 0
      %v235 = vsel %vm230, %v225, 0
      %237 = vmatprep.subr.bf16.mxu0 %v235
      %238 = vmatpush1.bf16.msra.mxu0 %v232
      %239 = vmatprep.subr.bf16.mxu0 0
      %240 = vmatpush1.bf16.msra.mxu0 0
      %241 = vmatprep.subr.bf16.mxu0 0
      %242 = vmatpush1.bf16.msra.mxu0 0
      %243 = vmatprep.subr.bf16.mxu0 0
      %244 = vmatpush1.bf16.msra.mxu0 0
      %245 = vmatprep.subr.bf16.mxu0 0
      %246 = vmatpush1.bf16.msra.mxu0 0
      %247 = vmatprep.subr.bf16.mxu0 0
      %248 = vmatpush1.bf16.msra.mxu0 0
      %249 = vmatprep.subr.bf16.mxu0 0
      %250 = vmatpush1.bf16.msra.mxu0 0
      %251 = vmatprep.subr.bf16.mxu0 0
      %252 = vmatpush1.bf16.msra.mxu0 0
      %253 = vmatprep.subr.bf16.mxu0 0
      %254 = vmatpush1.bf16.msra.mxu0 0
      %255 = vmatprep.subr.bf16.mxu0 0
      %256 = vmatpush1.bf16.msra.mxu0 0
      %257 = vmatprep.subr.bf16.mxu0 0
      %258 = vmatpush1.bf16.msra.mxu0 0
      %259 = vmatprep.subr.bf16.mxu0 0
      %260 = vmatpush1.bf16.msra.mxu0 0
      %261 = vmatprep.subr.bf16.mxu0 0
      %262 = vmatpush1.bf16.msra.mxu0 0
      %263 = vmatprep.subr.bf16.mxu0 0
      %264 = vmatpush1.bf16.msra.mxu0 0
      %265 = vmatprep.subr.bf16.mxu0 0
      %266 = vmatpush1.bf16.msra.mxu0 0
      %267 = vmatprep.subr.bf16.mxu0 0
      %268 = vmatpush1.bf16.msra.mxu0 0
      %269 = vmatprep.mubr.bf16.mxu0 0
      %270 = vmatmul.mubr.bf16.gmra.mrb[0].mxu0 %v228
      %v271 = vpop.f32.mrb[0].mxu0
      %v272 = vadd.f32 0.0, %v271
      %v273 = vpop.f32.mrb[0].mxu0
      %v274 = vadd.f32 0.0, %v273
      %v275 = vpop.f32.mrb[0].mxu0
      %v276 = vpop.f32.mrb[0].mxu0
      %277 = vdwg.mxu0
      %v280 = vunpack.c.l.s4 1983009808
      %v281 = vunpack.c.0.s8 %v280
      %v282 = vlaneseq
      %v283 = vshrl.u32 %v282, 7
      %v284 = vsub.s32 %v281, %v283
      %v285 = vrot.slane %v195, %v284
      %v286 = vcombine.high %v285, %v285
      %v288 = vsel %vm226, %v196, 0
      %v291 = vsel %vm230, %v285, 0
      %v294 = vsel %vm230, %v286, 0
      %296 = vmatprep.subr.bf16.mxu0 %v294
      %297 = vmatpush1.bf16.msra.mxu0 %v291
      %298 = vmatprep.subr.bf16.mxu0 0
      %299 = vmatpush1.bf16.msra.mxu0 0
      %300 = vmatprep.subr.bf16.mxu0 0
      %301 = vmatpush1.bf16.msra.mxu0 0
      %302 = vmatprep.subr.bf16.mxu0 0
      %303 = vmatpush1.bf16.msra.mxu0 0
      %304 = vmatprep.subr.bf16.mxu0 0
      %305 = vmatpush1.bf16.msra.mxu0 0
      %306 = vmatprep.subr.bf16.mxu0 0
      %307 = vmatpush1.bf16.msra.mxu0 0
      %308 = vmatprep.subr.bf16.mxu0 0
      %309 = vmatpush1.bf16.msra.mxu0 0
      %310 = vmatprep.subr.bf16.mxu0 0
      %311 = vmatpush1.bf16.msra.mxu0 0
      %312 = vmatprep.subr.bf16.mxu0 0
      %313 = vmatpush1.bf16.msra.mxu0 0
      %314 = vmatprep.subr.bf16.mxu0 0
      %315 = vmatpush1.bf16.msra.mxu0 0
      %316 = vmatprep.subr.bf16.mxu0 0
      %317 = vmatpush1.bf16.msra.mxu0 0
      %318 = vmatprep.subr.bf16.mxu0 0
      %319 = vmatpush1.bf16.msra.mxu0 0
      %320 = vmatprep.subr.bf16.mxu0 0
      %321 = vmatpush1.bf16.msra.mxu0 0
      %322 = vmatprep.subr.bf16.mxu0 0
      %323 = vmatpush1.bf16.msra.mxu0 0
      %324 = vmatprep.subr.bf16.mxu0 0
      %325 = vmatpush1.bf16.msra.mxu0 0
      %326 = vmatprep.subr.bf16.mxu0 0
      %327 = vmatpush1.bf16.msra.mxu0 0
      %328 = vmatprep.mubr.bf16.mxu0 0
      %329 = vmatmul.mubr.bf16.gmra.mrb[0].mxu0 %v288
      %v330 = vpop.f32.mrb[0].mxu0
      %v331 = vadd.f32 %v272, %v330
      %v332 = vpop.f32.mrb[0].mxu0
      %v333 = vadd.f32 %v274, %v332
      %v334 = vpop.f32.mrb[0].mxu0
      %v335 = vpop.f32.mrb[0].mxu0
      %336 = vdwg.mxu0
      %v337 = vld [vmem:[%s183] sm:$0x3f]
      %s338 = scalar_lea.vmem %s1, 8
      %v339 = vld [vmem:[%s338] sm:$0xf]
      %v341 = vcombine.high %v337, %v337
      %v343 = vunpack.c.l.s4 1983009808
      %v344 = vunpack.c.0.s8 %v343
      %v345 = vlaneseq
      %v346 = vshrl.u32 %v345, 7
      %v347 = vsub.s32 %v344, %v346
      %v348 = vrot.slane %v337, %v347
      %v350 = vunpack.c.l.s4 1983009808
      %v351 = vunpack.c.0.s8 %v350
      %v352 = vlaneseq
      %v353 = vshrl.u32 %v352, 7
      %v354 = vsub.s32 %v351, %v353
      %v355 = vrot.slane %v341, %v354
      %v356 = vcombine.high %v348, %v348
      %357 = vrot.lane.b32.xlu0 %v348, 126
      %v358 = vpop.permute.xlu0 %357
      %359 = vrot.lane.b32.xlu0 %v356, 126
      %v360 = vpop.permute.xlu0 %359
      %361 = vrot.lane.b32.xlu0 %v355, 126
      %v362 = vpop.permute.xlu0 %361
      %vm363 = vcmask 1031168
      %v364 = vsel %vm363, %v358, %v360
      %v365 = vsel %vm363, %v360, %v362
      %v367 = vsel %vm226, %v339, 0
      %v370 = vsel %vm230, %v364, 0
      %v373 = vsel %vm230, %v365, 0
      %375 = vmatprep.subr.bf16.mxu0 %v373
      %376 = vmatpush1.bf16.msra.mxu0 %v370
      %377 = vmatprep.subr.bf16.mxu0 0
      %378 = vmatpush1.bf16.msra.mxu0 0
      %379 = vmatprep.subr.bf16.mxu0 0
      %380 = vmatpush1.bf16.msra.mxu0 0
      %381 = vmatprep.subr.bf16.mxu0 0
      %382 = vmatpush1.bf16.msra.mxu0 0
      %383 = vmatprep.subr.bf16.mxu0 0
      %384 = vmatpush1.bf16.msra.mxu0 0
      %385 = vmatprep.subr.bf16.mxu0 0
      %386 = vmatpush1.bf16.msra.mxu0 0
      %387 = vmatprep.subr.bf16.mxu0 0
      %388 = vmatpush1.bf16.msra.mxu0 0
      %389 = vmatprep.subr.bf16.mxu0 0
      %390 = vmatpush1.bf16.msra.mxu0 0
      %391 = vmatprep.subr.bf16.mxu0 0
      %392 = vmatpush1.bf16.msra.mxu0 0
      %393 = vmatprep.subr.bf16.mxu0 0
      %394 = vmatpush1.bf16.msra.mxu0 0
      %395 = vmatprep.subr.bf16.mxu0 0
      %396 = vmatpush1.bf16.msra.mxu0 0
      %397 = vmatprep.subr.bf16.mxu0 0
      %398 = vmatpush1.bf16.msra.mxu0 0
      %399 = vmatprep.subr.bf16.mxu0 0
      %400 = vmatpush1.bf16.msra.mxu0 0
      %401 = vmatprep.subr.bf16.mxu0 0
      %402 = vmatpush1.bf16.msra.mxu0 0
      %403 = vmatprep.subr.bf16.mxu0 0
      %404 = vmatpush1.bf16.msra.mxu0 0
      %405 = vmatprep.subr.bf16.mxu0 0
      %406 = vmatpush1.bf16.msra.mxu0 0
      %407 = vmatprep.mubr.bf16.mxu0 0
      %408 = vmatmul.mubr.bf16.gmra.mrb[0].mxu0 %v367
      %v409 = vpop.f32.mrb[0].mxu0
      %v410 = vadd.f32 0.0, %v409
      %v411 = vpop.f32.mrb[0].mxu0
      %v412 = vadd.f32 0.0, %v411
      %v413 = vpop.f32.mrb[0].mxu0
      %v414 = vpop.f32.mrb[0].mxu0
      %415 = vdwg.mxu0
      %v416 = vadd.f32 %v331, %v410
      %v417 = vadd.f32 %v333, %v412
      %v418 = vld [vmem:[%s183] sm:$0x3f]
      %s419 = scalar_lea.vmem %s1, 12
      %v420 = vld [vmem:[%s419] sm:$0xf]
      %v422 = vcombine.high %v418, %v418
      %v424 = vunpack.c.l.s4 1983009808
      %v425 = vunpack.c.0.s8 %v424
      %v426 = vlaneseq
      %v427 = vshrl.u32 %v426, 7
      %v428 = vsub.s32 %v425, %v427
      %v429 = vrot.slane %v418, %v428
      %v431 = vunpack.c.l.s4 1983009808
      %v432 = vunpack.c.0.s8 %v431
      %v433 = vlaneseq
      %v434 = vshrl.u32 %v433, 7
      %v435 = vsub.s32 %v432, %v434
      %v436 = vrot.slane %v422, %v435
      %v437 = vcombine.high %v429, %v429
      %438 = vrot.lane.b32.xlu0 %v429, 112
      %v439 = vpop.permute.xlu0 %438
      %440 = vrot.lane.b32.xlu0 %v437, 112
      %v441 = vpop.permute.xlu0 %440
      %442 = vrot.lane.b32.xlu0 %v436, 112
      %v443 = vpop.permute.xlu0 %442
      %vm444 = vcmask 916480
      %v445 = vsel %vm444, %v439, %v441
      %v446 = vsel %vm444, %v441, %v443
      %v448 = vsel %vm226, %v420, 0
      %v451 = vsel %vm230, %v445, 0
      %v454 = vsel %vm230, %v446, 0
      %456 = vmatprep.subr.bf16.mxu0 %v454
      %457 = vmatpush1.bf16.msra.mxu0 %v451
      %458 = vmatprep.subr.bf16.mxu0 0
      %459 = vmatpush1.bf16.msra.mxu0 0
      %460 = vmatprep.subr.bf16.mxu0 0
      %461 = vmatpush1.bf16.msra.mxu0 0
      %462 = vmatprep.subr.bf16.mxu0 0
      %463 = vmatpush1.bf16.msra.mxu0 0
      %464 = vmatprep.subr.bf16.mxu0 0
      %465 = vmatpush1.bf16.msra.mxu0 0
      %466 = vmatprep.subr.bf16.mxu0 0
      %467 = vmatpush1.bf16.msra.mxu0 0
      %468 = vmatprep.subr.bf16.mxu0 0
      %469 = vmatpush1.bf16.msra.mxu0 0
      %470 = vmatprep.subr.bf16.mxu0 0
      %471 = vmatpush1.bf16.msra.mxu0 0
      %472 = vmatprep.subr.bf16.mxu0 0
      %473 = vmatpush1.bf16.msra.mxu0 0
      %474 = vmatprep.subr.bf16.mxu0 0
      %475 = vmatpush1.bf16.msra.mxu0 0
      %476 = vmatprep.subr.bf16.mxu0 0
      %477 = vmatpush1.bf16.msra.mxu0 0
      %478 = vmatprep.subr.bf16.mxu0 0
      %479 = vmatpush1.bf16.msra.mxu0 0
      %480 = vmatprep.subr.bf16.mxu0 0
      %481 = vmatpush1.bf16.msra.mxu0 0
      %482 = vmatprep.subr.bf16.mxu0 0
      %483 = vmatpush1.bf16.msra.mxu0 0
      %484 = vmatprep.subr.bf16.mxu0 0
      %485 = vmatpush1.bf16.msra.mxu0 0
      %486 = vmatprep.subr.bf16.mxu0 0
      %487 = vmatpush1.bf16.msra.mxu0 0
      %488 = vmatprep.mubr.bf16.mxu0 0
      %489 = vmatmul.mubr.bf16.gmra.mrb[0].mxu0 %v448
      %v490 = vpop.f32.mrb[0].mxu0
      %v491 = vadd.f32 0.0, %v490
      %v492 = vpop.f32.mrb[0].mxu0
      %v493 = vadd.f32 0.0, %v492
      %v494 = vpop.f32.mrb[0].mxu0
      %v495 = vpop.f32.mrb[0].mxu0
      %496 = vdwg.mxu0
      %v497 = vadd.f32 %v416, %v491
      %v498 = vadd.f32 %v417, %v493
      %v499 = vld [vmem:[%s183] sm:$0x3f]
      %s500 = scalar_lea.vmem %s1, 16
      %v501 = vld [vmem:[%s500] sm:$0xf]
      %v503 = vcombine.high %v499, %v499
      %v505 = vunpack.c.l.s4 1983009808
      %v506 = vunpack.c.0.s8 %v505
      %v507 = vlaneseq
      %v508 = vshrl.u32 %v507, 7
      %v509 = vsub.s32 %v506, %v508
      %v510 = vrot.slane %v499, %v509
      %v512 = vunpack.c.l.s4 1983009808
      %v513 = vunpack.c.0.s8 %v512
      %v514 = vlaneseq
      %v515 = vshrl.u32 %v514, 7
      %v516 = vsub.s32 %v513, %v515
      %v517 = vrot.slane %v503, %v516
      %v518 = vcombine.high %v510, %v510
      %519 = vrot.lane.b32.xlu0 %v510, 111
      %v520 = vpop.permute.xlu0 %519
      %521 = vrot.lane.b32.xlu0 %v518, 111
      %v522 = vpop.permute.xlu0 %521
      %523 = vrot.lane.b32.xlu0 %v517, 111
      %v524 = vpop.permute.xlu0 %523
      %vm525 = vcmask 908288
      %v526 = vsel %vm525, %v520, %v522
      %v527 = vsel %vm525, %v522, %v524
      %v529 = vsel %vm226, %v501, 0
      %v532 = vsel %vm230, %v526, 0
      %v535 = vsel %vm230, %v527, 0
      %537 = vmatprep.subr.bf16.mxu0 %v535
      %538 = vmatpush1.bf16.msra.mxu0 %v532
      %539 = vmatprep.subr.bf16.mxu0 0
      %540 = vmatpush1.bf16.msra.mxu0 0
      %541 = vmatprep.subr.bf16.mxu0 0
      %542 = vmatpush1.bf16.msra.mxu0 0
      %543 = vmatprep.subr.bf16.mxu0 0
      %544 = vmatpush1.bf16.msra.mxu0 0
      %545 = vmatprep.subr.bf16.mxu0 0
      %546 = vmatpush1.bf16.msra.mxu0 0
      %547 = vmatprep.subr.bf16.mxu0 0
      %548 = vmatpush1.bf16.msra.mxu0 0
      %549 = vmatprep.subr.bf16.mxu0 0
      %550 = vmatpush1.bf16.msra.mxu0 0
      %551 = vmatprep.subr.bf16.mxu0 0
      %552 = vmatpush1.bf16.msra.mxu0 0
      %553 = vmatprep.subr.bf16.mxu0 0
      %554 = vmatpush1.bf16.msra.mxu0 0
      %555 = vmatprep.subr.bf16.mxu0 0
      %556 = vmatpush1.bf16.msra.mxu0 0
      %557 = vmatprep.subr.bf16.mxu0 0
      %558 = vmatpush1.bf16.msra.mxu0 0
      %559 = vmatprep.subr.bf16.mxu0 0
      %560 = vmatpush1.bf16.msra.mxu0 0
      %561 = vmatprep.subr.bf16.mxu0 0
      %562 = vmatpush1.bf16.msra.mxu0 0
      %563 = vmatprep.subr.bf16.mxu0 0
      %564 = vmatpush1.bf16.msra.mxu0 0
      %565 = vmatprep.subr.bf16.mxu0 0
      %566 = vmatpush1.bf16.msra.mxu0 0
      %567 = vmatprep.subr.bf16.mxu0 0
      %568 = vmatpush1.bf16.msra.mxu0 0
      %569 = vmatprep.mubr.bf16.mxu0 0
      %570 = vmatmul.mubr.bf16.gmra.mrb[0].mxu0 %v529
      %v571 = vpop.f32.mrb[0].mxu0
      %v572 = vadd.f32 0.0, %v571
      %v573 = vpop.f32.mrb[0].mxu0
      %v574 = vadd.f32 0.0, %v573
      %v575 = vpop.f32.mrb[0].mxu0
      %v576 = vpop.f32.mrb[0].mxu0
      %577 = vdwg.mxu0
      %v578 = vadd.f32 %v497, %v572
      %v579 = vadd.f32 %v498, %v574
      %v580 = vld [vmem:[%s183] sm:$0x3f]
      %s581 = scalar_lea.vmem %s1, 20
      %v582 = vld [vmem:[%s581] sm:$0xf]
      %v584 = vcombine.high %v580, %v580
      %v586 = vunpack.c.l.s4 1983009808
      %v587 = vunpack.c.0.s8 %v586
      %v588 = vlaneseq
      %v589 = vshrl.u32 %v588, 7
      %v590 = vsub.s32 %v587, %v589
      %v591 = vrot.slane %v580, %v590
      %v593 = vunpack.c.l.s4 1983009808
      %v594 = vunpack.c.0.s8 %v593
      %v595 = vlaneseq
      %v596 = vshrl.u32 %v595, 7
      %v597 = vsub.s32 %v594, %v596
      %v598 = vrot.slane %v584, %v597
      %v599 = vcombine.high %v591, %v591
      %600 = vrot.lane.b32.xlu0 %v591, 110
      %v601 = vpop.permute.xlu0 %600
      %602 = vrot.lane.b32.xlu0 %v599, 110
      %v603 = vpop.permute.xlu0 %602
      %604 = vrot.lane.b32.xlu0 %v598, 110
      %v605 = vpop.permute.xlu0 %604
      %vm606 = vcmask 900096
      %v607 = vsel %vm606, %v601, %v603
      %v608 = vsel %vm606, %v603, %v605
      %v610 = vsel %vm226, %v582, 0
      %v613 = vsel %vm230, %v607, 0
      %v616 = vsel %vm230, %v608, 0
      %618 = vmatprep.subr.bf16.mxu0 %v616
      %619 = vmatpush1.bf16.msra.mxu0 %v613
      %620 = vmatprep.subr.bf16.mxu0 0
      %621 = vmatpush1.bf16.msra.mxu0 0
      %622 = vmatprep.subr.bf16.mxu0 0
      %623 = vmatpush1.bf16.msra.mxu0 0
      %624 = vmatprep.subr.bf16.mxu0 0
      %625 = vmatpush1.bf16.msra.mxu0 0
      %626 = vmatprep.subr.bf16.mxu0 0
      %627 = vmatpush1.bf16.msra.mxu0 0
      %628 = vmatprep.subr.bf16.mxu0 0
      %629 = vmatpush1.bf16.msra.mxu0 0
      %630 = vmatprep.subr.bf16.mxu0 0
      %631 = vmatpush1.bf16.msra.mxu0 0
      %632 = vmatprep.subr.bf16.mxu0 0
      %633 = vmatpush1.bf16.msra.mxu0 0
      %634 = vmatprep.subr.bf16.mxu0 0
      %635 = vmatpush1.bf16.msra.mxu0 0
      %636 = vmatprep.subr.bf16.mxu0 0
      %637 = vmatpush1.bf16.msra.mxu0 0
      %638 = vmatprep.subr.bf16.mxu0 0
      %639 = vmatpush1.bf16.msra.mxu0 0
      %640 = vmatprep.subr.bf16.mxu0 0
      %641 = vmatpush1.bf16.msra.mxu0 0
      %642 = vmatprep.subr.bf16.mxu0 0
      %643 = vmatpush1.bf16.msra.mxu0 0
      %644 = vmatprep.subr.bf16.mxu0 0
      %645 = vmatpush1.bf16.msra.mxu0 0
      %646 = vmatprep.subr.bf16.mxu0 0
      %647 = vmatpush1.bf16.msra.mxu0 0
      %648 = vmatprep.subr.bf16.mxu0 0
      %649 = vmatpush1.bf16.msra.mxu0 0
      %650 = vmatprep.mubr.bf16.mxu0 0
      %651 = vmatmul.mubr.bf16.gmra.mrb[0].mxu0 %v610
      %v652 = vpop.f32.mrb[0].mxu0
      %v653 = vadd.f32 0.0, %v652
      %v654 = vpop.f32.mrb[0].mxu0
      %v655 = vadd.f32 0.0, %v654
      %v656 = vpop.f32.mrb[0].mxu0
      %v657 = vpop.f32.mrb[0].mxu0
      %658 = vdwg.mxu0
      %v659 = vadd.f32 %v578, %v653
      %v660 = vadd.f32 %v579, %v655
      %v661 = vld [vmem:[%s183] sm:$0x3f]
      %s662 = scalar_lea.vmem %s1, 24
      %v663 = vld [vmem:[%s662] sm:$0xf]
      %v665 = vcombine.high %v661, %v661
      %v667 = vunpack.c.l.s4 1983009808
      %v668 = vunpack.c.0.s8 %v667
      %v669 = vlaneseq
      %v670 = vshrl.u32 %v669, 7
      %v671 = vsub.s32 %v668, %v670
      %v672 = vrot.slane %v661, %v671
      %v674 = vunpack.c.l.s4 1983009808
      %v675 = vunpack.c.0.s8 %v674
      %v676 = vlaneseq
      %v677 = vshrl.u32 %v676, 7
      %v678 = vsub.s32 %v675, %v677
      %v679 = vrot.slane %v665, %v678
      %v680 = vcombine.high %v672, %v672
      %681 = vrot.lane.b32.xlu0 %v672, 96
      %v682 = vpop.permute.xlu0 %681
      %683 = vrot.lane.b32.xlu0 %v680, 96
      %v684 = vpop.permute.xlu0 %683
      %685 = vrot.lane.b32.xlu0 %v679, 96
      %v686 = vpop.permute.xlu0 %685
      %vm687 = vcmask 785408
      %v688 = vsel %vm687, %v682, %v684
      %v689 = vsel %vm687, %v684, %v686
      %v691 = vsel %vm226, %v663, 0
      %v694 = vsel %vm230, %v688, 0
      %v697 = vsel %vm230, %v689, 0
      %699 = vmatprep.subr.bf16.mxu0 %v697
      %700 = vmatpush1.bf16.msra.mxu0 %v694
      %701 = vmatprep.subr.bf16.mxu0 0
      %702 = vmatpush1.bf16.msra.mxu0 0
      %703 = vmatprep.subr.bf16.mxu0 0
      %704 = vmatpush1.bf16.msra.mxu0 0
      %705 = vmatprep.subr.bf16.mxu0 0
      %706 = vmatpush1.bf16.msra.mxu0 0
      %707 = vmatprep.subr.bf16.mxu0 0
      %708 = vmatpush1.bf16.msra.mxu0 0
      %709 = vmatprep.subr.bf16.mxu0 0
      %710 = vmatpush1.bf16.msra.mxu0 0
      %711 = vmatprep.subr.bf16.mxu0 0
      %712 = vmatpush1.bf16.msra.mxu0 0
      %713 = vmatprep.subr.bf16.mxu0 0
      %714 = vmatpush1.bf16.msra.mxu0 0
      %715 = vmatprep.subr.bf16.mxu0 0
      %716 = vmatpush1.bf16.msra.mxu0 0
      %717 = vmatprep.subr.bf16.mxu0 0
      %718 = vmatpush1.bf16.msra.mxu0 0
      %719 = vmatprep.subr.bf16.mxu0 0
      %720 = vmatpush1.bf16.msra.mxu0 0
      %721 = vmatprep.subr.bf16.mxu0 0
      %722 = vmatpush1.bf16.msra.mxu0 0
      %723 = vmatprep.subr.bf16.mxu0 0
      %724 = vmatpush1.bf16.msra.mxu0 0
      %725 = vmatprep.subr.bf16.mxu0 0
      %726 = vmatpush1.bf16.msra.mxu0 0
      %727 = vmatprep.subr.bf16.mxu0 0
      %728 = vmatpush1.bf16.msra.mxu0 0
      %729 = vmatprep.subr.bf16.mxu0 0
      %730 = vmatpush1.bf16.msra.mxu0 0
      %731 = vmatprep.mubr.bf16.mxu0 0
      %732 = vmatmul.mubr.bf16.gmra.mrb[0].mxu0 %v691
      %v733 = vpop.f32.mrb[0].mxu0
      %v734 = vadd.f32 0.0, %v733
      %v735 = vpop.f32.mrb[0].mxu0
      %v736 = vadd.f32 0.0, %v735
      %v737 = vpop.f32.mrb[0].mxu0
      %v738 = vpop.f32.mrb[0].mxu0
      %739 = vdwg.mxu0
      %v740 = vadd.f32 %v659, %v734
      %v741 = vadd.f32 %v660, %v736
      %v742 = vld [vmem:[%s183] sm:$0x3f]
      %s743 = scalar_lea.vmem %s1, 28
      %v744 = vld [vmem:[%s743] sm:$0xf]
      %v746 = vcombine.high %v742, %v742
      %v748 = vunpack.c.l.s4 1983009808
      %v749 = vunpack.c.0.s8 %v748
      %v750 = vlaneseq
      %v751 = vshrl.u32 %v750, 7
      %v752 = vsub.s32 %v749, %v751
      %v753 = vrot.slane %v742, %v752
      %v755 = vunpack.c.l.s4 1983009808
      %v756 = vunpack.c.0.s8 %v755
      %v757 = vlaneseq
      %v758 = vshrl.u32 %v757, 7
      %v759 = vsub.s32 %v756, %v758
      %v760 = vrot.slane %v746, %v759
      %v761 = vcombine.high %v753, %v753
      %762 = vrot.lane.b32.xlu0 %v753, 95
      %v763 = vpop.permute.xlu0 %762
      %764 = vrot.lane.b32.xlu0 %v761, 95
      %v765 = vpop.permute.xlu0 %764
      %766 = vrot.lane.b32.xlu0 %v760, 95
      %v767 = vpop.permute.xlu0 %766
      %vm768 = vcmask 777216
      %v769 = vsel %vm768, %v763, %v765
      %v770 = vsel %vm768, %v765, %v767
      %v772 = vsel %vm226, %v744, 0
      %v775 = vsel %vm230, %v769, 0
      %v778 = vsel %vm230, %v770, 0
      %780 = vmatprep.subr.bf16.mxu0 %v778
      %781 = vmatpush1.bf16.msra.mxu0 %v775
      %782 = vmatprep.subr.bf16.mxu0 0
      %783 = vmatpush1.bf16.msra.mxu0 0
      %784 = vmatprep.subr.bf16.mxu0 0
      %785 = vmatpush1.bf16.msra.mxu0 0
      %786 = vmatprep.subr.bf16.mxu0 0
      %787 = vmatpush1.bf16.msra.mxu0 0
      %788 = vmatprep.subr.bf16.mxu0 0
      %789 = vmatpush1.bf16.msra.mxu0 0
      %790 = vmatprep.subr.bf16.mxu0 0
      %791 = vmatpush1.bf16.msra.mxu0 0
      %792 = vmatprep.subr.bf16.mxu0 0
      %793 = vmatpush1.bf16.msra.mxu0 0
      %794 = vmatprep.subr.bf16.mxu0 0
      %795 = vmatpush1.bf16.msra.mxu0 0
      %796 = vmatprep.subr.bf16.mxu0 0
      %797 = vmatpush1.bf16.msra.mxu0 0
      %798 = vmatprep.subr.bf16.mxu0 0
      %799 = vmatpush1.bf16.msra.mxu0 0
      %800 = vmatprep.subr.bf16.mxu0 0
      %801 = vmatpush1.bf16.msra.mxu0 0
      %802 = vmatprep.subr.bf16.mxu0 0
      %803 = vmatpush1.bf16.msra.mxu0 0
      %804 = vmatprep.subr.bf16.mxu0 0
      %805 = vmatpush1.bf16.msra.mxu0 0
      %806 = vmatprep.subr.bf16.mxu0 0
      %807 = vmatpush1.bf16.msra.mxu0 0
      %808 = vmatprep.subr.bf16.mxu0 0
      %809 = vmatpush1.bf16.msra.mxu0 0
      %810 = vmatprep.subr.bf16.mxu0 0
      %811 = vmatpush1.bf16.msra.mxu0 0
      %812 = vmatprep.mubr.bf16.mxu0 0
      %813 = vmatmul.mubr.bf16.gmra.mrb[0].mxu0 %v772
      %v814 = vpop.f32.mrb[0].mxu0
      %v815 = vadd.f32 0.0, %v814
      %v816 = vpop.f32.mrb[0].mxu0
      %v817 = vadd.f32 0.0, %v816
      %v818 = vpop.f32.mrb[0].mxu0
      %v819 = vpop.f32.mrb[0].mxu0
      %820 = vdwg.mxu0
      %v821 = vadd.f32 %v740, %v815
      %v822 = vadd.f32 %v741, %v817
      %v823 = vld [vmem:[%s183] sm:$0x3f]
      %s824 = scalar_lea.vmem %s1, 32
      %v825 = vld [vmem:[%s824] sm:$0xf]
      %v827 = vcombine.high %v823, %v823
      %v829 = vunpack.c.l.s4 1983009808
      %v830 = vunpack.c.0.s8 %v829
      %v831 = vlaneseq
      %v832 = vshrl.u32 %v831, 7
      %v833 = vsub.s32 %v830, %v832
      %v834 = vrot.slane %v823, %v833
      %v836 = vunpack.c.l.s4 1983009808
      %v837 = vunpack.c.0.s8 %v836
      %v838 = vlaneseq
      %v839 = vshrl.u32 %v838, 7
      %v840 = vsub.s32 %v837, %v839
      %v841 = vrot.slane %v827, %v840
      %v842 = vcombine.high %v834, %v834
      %843 = vrot.lane.b32.xlu0 %v834, 94
      %v844 = vpop.permute.xlu0 %843
      %845 = vrot.lane.b32.xlu0 %v842, 94
      %v846 = vpop.permute.xlu0 %845
      %847 = vrot.lane.b32.xlu0 %v841, 94
      %v848 = vpop.permute.xlu0 %847
      %vm849 = vcmask 769024
      %v850 = vsel %vm849, %v844, %v846
      %v851 = vsel %vm849, %v846, %v848
      %v853 = vsel %vm226, %v825, 0
      %v856 = vsel %vm230, %v850, 0
      %v859 = vsel %vm230, %v851, 0
      %861 = vmatprep.subr.bf16.mxu0 %v859
      %862 = vmatpush1.bf16.msra.mxu0 %v856
      %863 = vmatprep.subr.bf16.mxu0 0
      %864 = vmatpush1.bf16.msra.mxu0 0
      %865 = vmatprep.subr.bf16.mxu0 0
      %866 = vmatpush1.bf16.msra.mxu0 0
      %867 = vmatprep.subr.bf16.mxu0 0
      %868 = vmatpush1.bf16.msra.mxu0 0
      %869 = vmatprep.subr.bf16.mxu0 0
      %870 = vmatpush1.bf16.msra.mxu0 0
      %871 = vmatprep.subr.bf16.mxu0 0
      %872 = vmatpush1.bf16.msra.mxu0 0
      %873 = vmatprep.subr.bf16.mxu0 0
      %874 = vmatpush1.bf16.msra.mxu0 0
      %875 = vmatprep.subr.bf16.mxu0 0
      %876 = vmatpush1.bf16.msra.mxu0 0
      %877 = vmatprep.subr.bf16.mxu0 0
      %878 = vmatpush1.bf16.msra.mxu0 0
      %879 = vmatprep.subr.bf16.mxu0 0
      %880 = vmatpush1.bf16.msra.mxu0 0
      %881 = vmatprep.subr.bf16.mxu0 0
      %882 = vmatpush1.bf16.msra.mxu0 0
      %883 = vmatprep.subr.bf16.mxu0 0
      %884 = vmatpush1.bf16.msra.mxu0 0
      %885 = vmatprep.subr.bf16.mxu0 0
      %886 = vmatpush1.bf16.msra.mxu0 0
      %887 = vmatprep.subr.bf16.mxu0 0
      %888 = vmatpush1.bf16.msra.mxu0 0
      %889 = vmatprep.subr.bf16.mxu0 0
      %890 = vmatpush1.bf16.msra.mxu0 0
      %891 = vmatprep.subr.bf16.mxu0 0
      %892 = vmatpush1.bf16.msra.mxu0 0
      %893 = vmatprep.mubr.bf16.mxu0 0
      %894 = vmatmul.mubr.bf16.gmra.mrb[0].mxu0 %v853
      %v895 = vpop.f32.mrb[0].mxu0
      %v896 = vadd.f32 0.0, %v895
      %v897 = vpop.f32.mrb[0].mxu0
      %v898 = vadd.f32 0.0, %v897
      %v899 = vpop.f32.mrb[0].mxu0
      %v900 = vpop.f32.mrb[0].mxu0
      %901 = vdwg.mxu0
      %v902 = vadd.f32 %v821, %v896
      %v903 = vadd.f32 %v822, %v898
      %v904 = vld [vmem:[%s2] sm:$0xff]
      %906 = vset.pattern.permute.xlu0 0
      %907 = vperm.xlu0 %906, %v904
      %v908 = vpop.permute.xlu0 %907
      %v910 = vadd.f32 %v902, %v908
      %v911 = vadd.f32 %v903, %v908
      %v912 = vmax.f32 %v910, 0.0
      %v913 = vmax.f32 %v911, 0.0
      %914 = vst [vmem:[%s192] sm:$0xff] %v912
      %915 = vst [vmem:[%s192 + $0x8] sm:$0xff] %v913
      %s916 = smul.u32 2, %s19
      %p917 = scmp.lt.s32.totalorder %s18, 1
      %s918 = scalar_select %p917, %s18, 1
      %p919 = scmp.lt.s32.totalorder %s916, 1
      %s920 = scalar_select %p919, %s916, 1
      %s921 = smul.addr %s918, 2
      %s922 = sadd.s32 %s920, %s921
      %s923 = smul.addr %s922, 8
      %s924 = scalar_lea.vmem %s3, %s923
      // Predicated region
      $region33: #{conv2d_bn_relu.1} parent=31 // pred_check
        %p925 = pneg %p114
      $region34: #{conv2d_bn_relu.1} parent=31 // pred_check_branch
        %927 = sbr.rel (%p925) target = $region36
      $region35: #{conv2d_bn_relu.1} parent=31 // pred_region
        %s928 = smul.u32 2, %s19
      $region36: #{conv2d_bn_relu.1} parent=31 // pred_fallthru
        _
    $region32: #{conv2d_bn_relu.1} parent=5 // pred_fallthru
      _
    %p929 = scmp.le.s32.totalorder 2, %s9
    // Predicated region
    $region37: #{conv2d_bn_relu.1} parent=5 // pred_check
      %p930 = pneg %p929
    $region38: #{conv2d_bn_relu.1} parent=5 // pred_check_branch
      %932 = sbr.rel (%p930) target = $region40
    $region39: #{conv2d_bn_relu.1} parent=5 // pred_region
      %s933 = ssub.s32 %s9, 2
      // Predicated region
      $region41: #{conv2d_bn_relu.1} parent=39 // pred_check
        %p934 = pneg %p120
      $region42: #{conv2d_bn_relu.1} parent=39 // pred_check_branch
        %936 = sbr.rel (%p934) target = $region44
      $region43: #{conv2d_bn_relu.1} parent=39 // pred_region
        %s937 = smul.u32 2, %s21
        %p938 = scmp.lt.s32.totalorder %s20, 1
        %s939 = scalar_select %p938, %s20, 1
        %p940 = scmp.lt.s32.totalorder %s937, 1
        %s941 = scalar_select %p940, %s937, 1
        %s942 = smul.addr %s939, 2
        %s943 = sadd.s32 %s941, %s942
        %s944 = smul.addr %s943, 8
        %s945 = scalar_lea.vmem %s3, %s944
      $region44: #{conv2d_bn_relu.1} parent=39 // pred_fallthru
        _
    $region40: #{conv2d_bn_relu.1} parent=5 // pred_fallthru
      _
  $region6: #{conv2d_bn_relu.1} parent=0 // loop_footer
    %s13 = sadd.s32 1, %s9
  $region7: #{conv2d_bn_relu.1} parent=0 // loop_footer_branch
    %8 = sbr.rel target = $region3
  $region8: #{conv2d_bn_relu.1} parent=0 // loop_exit
    _

</llo_original>
